<compile_context>
chip_gen: v7x
topology: tpu7x:2x2x1
jax: 0.10.0
libtpu: 0.0.40
codegen_flags: <defaults>
</compile_context>

<pallas_src>
import jax
import jax.numpy as jnp
import numpy as np
from jax.experimental import pallas as pl
from jax.experimental.pallas import tpu as pltpu

HP = 128   # padded hidden size  (real H in lanes [0:H))
DP = 128   # padded input size   (real embed+cond in lanes [0:E+C))
VP = 128   # padded vocab size   (real V in lanes [0:V))


def decode_kernel(toks_smem, emb_ref, cond_ref, h0_ref, wx_ref, wh_ref, bcat_ref,
                  wfc_ref, bfc_ref, logits_ref, hlast_ref, h_scr):
    """One GRU-cell step + Linear head; hidden carried in VMEM scratch across the grid."""
    del toks_smem   # consumed by the index_maps (embedding-row gather), not the body
    t = pl.program_id(0)

    @pl.when(t == 0)
    def _():
        h_scr[...] = h0_ref[...]     # padded lanes [H:HP) are zero and stay zero

    hp = h_scr.shape[1]
    # x row: embedding (lanes [0:E)) + cond (lanes [E:E+C)) -- disjoint, so add == concat
    x = emb_ref[0] + cond_ref[...]                      # (1, DP) f32
    h = h_scr[...]                                      # (1, HP) f32

    # two bf16 MXU pushes, f32 accumulation; column groups [r | z | i_n | h_n]
    g = (jnp.dot(x.astype(jnp.bfloat16), wx_ref[...],
                 preferred_element_type=jnp.float32)
         + jnp.dot(h.astype(jnp.bfloat16), wh_ref[...],
                   preferred_element_type=jnp.float32)
         + bcat_ref[...])                               # (1, 4*HP) f32

    # 128-lane-aligned gate blocks -> whole-vreg slices; gate math stays f32 (v5e-safe)
    r = jax.nn.sigmoid(g[:, 0:hp])                      # sigma(i_r + h_r + b_ir + b_hr)
    z = jax.nn.sigmoid(g[:, hp:2 * hp])                 # sigma(i_z + h_z + b_iz + b_hz)
    n = jnp.tanh(g[:, 2 * hp:3 * hp] + r * g[:, 3 * hp:4 * hp])   # tanh(i_n+b_in + r*(h_n+b_hn))
    h_new = (1.0 - z) * n + z * h

    h_scr[...] = h_new
    hlast_ref[...] = h_new                              # resident output (constant index_map)
    logits_ref[0] = (jnp.dot(h_new.astype(jnp.bfloat16), wfc_ref[...],
                             preferred_element_type=jnp.float32) + bfc_ref[...])


def fused_decode(toks, emb_pad, cond_pad, h0_pad, w_x, w_h, b_cat, w_fc, b_fc):
    """T-step (teacher-forced) decode; weights DMA'd once and VMEM-resident for all steps."""
    T = toks.shape[0]
    const2 = lambda t, toks: (0, 0)
    grid_spec = pltpu.PrefetchScalarGridSpec(
        num_scalar_prefetch=1,               # toks -> SMEM, visible to every index_map
        grid=(T,),
        in_specs=[
            # per-step embedding row, gathered by the pipeline from the prefetched token id
            pl.BlockSpec((1, 1, DP), lambda t, toks: (toks[t], 0, 0)),
            pl.BlockSpec((1, DP), const2),           # cond (padded), resident
            pl.BlockSpec((1, HP), const2),           # initial hidden, resident
            pl.BlockSpec((DP, 4 * HP), const2),      # W_x   (resident, DMA'd once)
            pl.BlockSpec((HP, 4 * HP), const2),      # W_h
            pl.BlockSpec((1, 4 * HP), const2),       # fused bias
            pl.BlockSpec((HP, VP), const2),          # W_fc
            pl.BlockSpec((1, VP), const2),           # b_fc
        ],
        out_specs=(
            pl.BlockSpec((1, 1, VP), lambda t, toks: (t, 0, 0)),   # per-step logits
            pl.BlockSpec((1, HP), const2),                         # final hidden (resident)
        ),
        scratch_shapes=[pltpu.VMEM((1, HP), jnp.float32)],         # carried hidden state
    )
    flops = T * (2 * DP * 4 * HP + 2 * HP * 4 * HP + 2 * HP * VP + 12 * HP)
    bytes_in = sum(int(a.size) * a.dtype.itemsize
                   for a in (cond_pad, h0_pad, w_x, w_h, b_cat, w_fc, b_fc))
    bytes_in += T * DP * 4 + T * 4            # one embedding row + one token id per step
    bytes_out = T * VP * 4 + HP * 4
    return pl.pallas_call(
        decode_kernel,
        grid_spec=grid_spec,
        out_shape=(
            jax.ShapeDtypeStruct((T, 1, VP), jnp.float32),   # padded per-step logits
            jax.ShapeDtypeStruct((1, HP), jnp.float32),      # padded final hidden
        ),
        compiler_params=pltpu.CompilerParams(dimension_semantics=("arbitrary",)),
        cost_estimate=pl.CostEstimate(flops=flops, transcendentals=T * 3 * HP,
                                      bytes_accessed=bytes_in + bytes_out),
    )(toks, emb_pad, cond_pad, h0_pad, w_x, w_h, b_cat, w_fc, b_fc)


class GeneratorPallas:
    """JAX/Pallas port of the PyTorch Generator (GRU decoder with Linear head)."""

    def __init__(self, cond_size, hidden_size, vocab_size, embed_dim, key):
        self.cond_size = cond_size
        self.hidden_size = hidden_size
        self.vocab_size = vocab_size
        self.embed_dim = embed_dim
        self.d_in = cond_size + embed_dim
        assert self.d_in <= DP and hidden_size <= HP and vocab_size <= VP

        ks = jax.random.split(key, 7)
        s = 0.1
        # deterministic synthetic parameters (no checkpoint load), PyTorch layout
        self.embedding = jax.random.normal(ks[0], (vocab_size, embed_dim), jnp.float32) * s
        # GRU params: weight_ih (3H, D_in), weight_hh (3H, H); gate order r, z, n
        self.w_ih = jax.random.normal(ks[1], (3 * hidden_size, self.d_in), jnp.float32) * s
        self.w_hh = jax.random.normal(ks[2], (3 * hidden_size, hidden_size), jnp.float32) * s
        self.b_ih = jax.random.normal(ks[3], (3 * hidden_size,), jnp.float32) * s
        self.b_hh = jax.random.normal(ks[4], (3 * hidden_size,), jnp.float32) * s
        # fc: Linear(hidden, vocab)
        self.w_fc = jax.random.normal(ks[5], (vocab_size, hidden_size), jnp.float32) * s
        self.b_fc = jax.random.normal(ks[6], (vocab_size,), jnp.float32) * s

        H, D, V, E, C = hidden_size, self.d_in, vocab_size, embed_dim, cond_size
        wih_t = self.w_ih.T        # (D, 3H)   columns [r | z | n]; rows [embed | cond]
        whh_t = self.w_hh.T        # (H, 3H)

        # padded embedding table: row v holds embedding in lanes [0:E), zeros elsewhere
        self.emb_pad = (jnp.zeros((V, 1, DP), jnp.float32)
                        .at[:, 0, 0:E].set(self.embedding))

        # split padded weights: column groups [r | z | i_n | h_n], each HP lanes wide
        wx = jnp.zeros((DP, 4 * HP), jnp.float32)
        wx = wx.at[0:D, 0:H].set(wih_t[:, 0:H])                           # r from x
        wx = wx.at[0:D, HP:HP + H].set(wih_t[:, H:2 * H])                 # z from x
        wx = wx.at[0:D, 2 * HP:2 * HP + H].set(wih_t[:, 2 * H:3 * H])     # i_n (x only)
        self.w_x = wx.astype(jnp.bfloat16)

        wh = jnp.zeros((HP, 4 * HP), jnp.float32)
        wh = wh.at[0:H, 0:H].set(whh_t[:, 0:H])                           # r from h
        wh = wh.at[0:H, HP:HP + H].set(whh_t[:, H:2 * H])                 # z from h
        wh = wh.at[0:H, 3 * HP:3 * HP + H].set(whh_t[:, 2 * H:3 * H])     # h_n (h only)
        self.w_h = wh.astype(jnp.bfloat16)

        bcat = jnp.zeros((1, 4 * HP), jnp.float32)
        bcat = bcat.at[0, 0:H].set(self.b_ih[0:H] + self.b_hh[0:H])                 # b_ir+b_hr
        bcat = bcat.at[0, HP:HP + H].set(self.b_ih[H:2 * H] + self.b_hh[H:2 * H])   # b_iz+b_hz
        bcat = bcat.at[0, 2 * HP:2 * HP + H].set(self.b_ih[2 * H:3 * H])            # b_in
        bcat = bcat.at[0, 3 * HP:3 * HP + H].set(self.b_hh[2 * H:3 * H])            # b_hn
        self.b_cat = bcat                                                           # f32

        self.w_fc_p = (jnp.zeros((HP, VP), jnp.float32)
                       .at[0:H, 0:V].set(self.w_fc.T)).astype(jnp.bfloat16)
        self.b_fc_p = jnp.zeros((1, VP), jnp.float32).at[0, 0:V].set(self.b_fc)

        def _decode(toks, cond, hidden, emb_pad, w_x, w_h, b_cat, w_fc_p, b_fc_p):
            # cond / hidden padded ONCE per decode call (not per token)
            cond_pad = (jnp.zeros((1, DP), jnp.float32)
                        .at[0, E:E + C].set(cond.reshape(-1).astype(jnp.float32)))
            # NOTE: padded hidden lanes [H:HP) must be zero; the kernel keeps them zero.
            h0_pad = (jnp.zeros((1, HP), jnp.float32)
                      .at[0, 0:H].set(hidden.reshape(-1)[:H].astype(jnp.float32)))
            return fused_decode(toks.astype(jnp.int32), emb_pad, cond_pad, h0_pad,
                                w_x, w_h, b_cat, w_fc_p, b_fc_p)

        self._decode_jit = jax.jit(_decode)

    def init_hidden(self):
        return jnp.zeros((1, 1, self.hidden_size), jnp.float32)

    def decode(self, toks, cond, hidden):
        """Fused multi-token decode: toks (T,) int32 -> logits (T, V), hidden (1,1,H)."""
        logits_p, hlast_p = self._decode_jit(toks, cond, hidden, self.emb_pad,
                                             self.w_x, self.w_h, self.b_cat,
                                             self.w_fc_p, self.b_fc_p)
        logits = logits_p[:, 0, :self.vocab_size]
        hidden_out = hlast_p[:, :self.hidden_size].reshape(1, 1, self.hidden_size)
        return logits, hidden_out

    def forward(self, inp, cond, hidden):
        """Single-step forward matching the PyTorch module (inp: int (1,1) token id)."""
        toks = inp.reshape(-1).astype(jnp.int32)                  # (1,)
        logits, hidden_out = self.decode(toks, cond, hidden)
        out = logits.reshape(1, 1, self.vocab_size)
        return out, hidden_out


def _gru_step_ref(gen, tok, cond, h, quant):
    """Pure-JAX single GRU-cell step + Linear; quant mirrors the kernel's bf16 numerics."""
    H = gen.hidden_size
    q = (lambda a: a.astype(jnp.bfloat16).astype(jnp.float32)) if quant else (lambda a: a)
    embed = gen.embedding[tok]
    x = jnp.concatenate([embed, cond.reshape(-1)], axis=0).reshape(1, -1)
    gi = q(x) @ q(gen.w_ih).T + gen.b_ih
    gh = q(h) @ q(gen.w_hh).T + gen.b_hh
    r = jax.nn.sigmoid(gi[:, :H] + gh[:, :H])
    z = jax.nn.sigmoid(gi[:, H:2 * H] + gh[:, H:2 * H])
    n = jnp.tanh(gi[:, 2 * H:] + r * gh[:, 2 * H:])
    h_new = (1.0 - z) * n + z * h
    out = q(h_new) @ q(gen.w_fc).T + gen.b_fc
    return out, h_new


def _reference_decode(gen, toks, cond, hidden, quant=True):
    """Step-by-step pure-JAX reference of the original PyTorch semantics."""
    H = gen.hidden_size
    h = hidden.reshape(1, H).astype(jnp.float32)
    outs = []
    for t in range(int(toks.shape[0])):
        out, h = _gru_step_ref(gen, toks[t], cond, h, quant)
        outs.append(out)
    return jnp.concatenate(outs, axis=0), h


if __name__ == "__main__":
    key = jax.random.PRNGKey(0)
    k_param, k_cond, k_tok, k_seq = jax.random.split(key, 4)

    cond_size, hidden_size, vocab_size, embed_dim = 16, 32, 64, 16
    gen = GeneratorPallas(cond_size, hidden_size, vocab_size, embed_dim, k_param)

    cond = jax.random.normal(k_cond, (cond_size,), jnp.float32)
    hidden = gen.init_hidden()

    # --- single-step forward: exact semantics of the PyTorch module ---
    inp = jax.random.randint(k_tok, (1, 1), 0, vocab_size, dtype=jnp.int32)
    out, h_new = gen.forward(inp, cond, hidden)
    out = jax.block_until_ready(out)
    h_new = jax.block_until_ready(h_new)
    assert out.shape == (1, 1, vocab_size) and h_new.shape == (1, 1, hidden_size)

    ref_out, ref_h = _reference_decode(gen, inp.reshape(-1), cond, hidden, quant=True)
    np.testing.assert_allclose(np.asarray(out[0]), np.asarray(ref_out), rtol=2e-3, atol=2e-3)
    np.testing.assert_allclose(np.asarray(h_new.reshape(1, -1)), np.asarray(ref_h),
                               rtol=2e-3, atol=2e-3)

    f32_out, f32_h = _reference_decode(gen, inp.reshape(-1), cond, hidden, quant=False)
    np.testing.assert_allclose(np.asarray(out[0]), np.asarray(f32_out), rtol=3e-2, atol=3e-2)
    np.testing.assert_allclose(np.asarray(h_new.reshape(1, -1)), np.asarray(f32_h),
                               rtol=3e-2, atol=3e-2)

    # --- fused multi-token decode: weights resident, hidden carried in VMEM scratch ---
    T = 8
    toks = jax.random.randint(k_seq, (T,), 0, vocab_size, dtype=jnp.int32)
    logits_seq, h_last = gen.decode(toks, cond, hidden)
    logits_seq = jax.block_until_ready(logits_seq)
    h_last = jax.block_until_ready(h_last)
    assert logits_seq.shape == (T, vocab_size) and h_last.shape == (1, 1, hidden_size)

    ref_seq, ref_hT = _reference_decode(gen, toks, cond, hidden, quant=True)
    np.testing.assert_allclose(np.asarray(logits_seq), np.asarray(ref_seq), rtol=2e-3, atol=2e-3)
    np.testing.assert_allclose(np.asarray(h_last.reshape(1, -1)), np.asarray(ref_hT),
                               rtol=2e-3, atol=2e-3)

    f32_seq, _ = _reference_decode(gen, toks, cond, hidden, quant=False)
    np.testing.assert_allclose(np.asarray(logits_seq), np.asarray(f32_seq), rtol=3e-2, atol=3e-2)

    print("KERNEL_OK")
</pallas_src>

<mosaic_0001>
module attributes {stable_mosaic.version = 11 : i64} {
  func.func @decode_kernel(%arg0: i32, %arg1: memref<1xi32, #tpu.memory_space<smem>>, %arg2: memref<1x1x128xf32, #tpu.memory_space<vmem>>, %arg3: memref<1x128xf32, #tpu.memory_space<vmem>>, %arg4: memref<1x128xf32, #tpu.memory_space<vmem>>, %arg5: memref<128x512xbf16, #tpu.memory_space<vmem>>, %arg6: memref<128x512xbf16, #tpu.memory_space<vmem>>, %arg7: memref<1x512xf32, #tpu.memory_space<vmem>>, %arg8: memref<128x128xbf16, #tpu.memory_space<vmem>>, %arg9: memref<1x128xf32, #tpu.memory_space<vmem>>, %arg10: memref<1x1x128xf32, #tpu.memory_space<vmem>>, %arg11: memref<1x128xf32, #tpu.memory_space<vmem>>, %arg12: memref<1x128xf32, #tpu.memory_space<vmem>>) attributes {dimension_semantics = [#tpu.dimension_semantics<arbitrary>], iteration_bounds = array<i64: 1>, scalar_prefetch = 1 : i64, scratch_operands = 1 : i64, tpu.core_type = #tpu.core_type<tc>, window_params = [{transform_indices = @transform_0, window_bounds = array<i64: 1, 1, 128>}, {pipeline_mode = #tpu.pipeline_mode<synchronous>, transform_indices = @transform_1, window_bounds = array<i64: 1, 128>}, {pipeline_mode = #tpu.pipeline_mode<synchronous>, transform_indices = @transform_2, window_bounds = array<i64: 1, 128>}, {pipeline_mode = #tpu.pipeline_mode<synchronous>, transform_indices = @transform_3, window_bounds = array<i64: 128, 512>}, {pipeline_mode = #tpu.pipeline_mode<synchronous>, transform_indices = @transform_4, window_bounds = array<i64: 128, 512>}, {pipeline_mode = #tpu.pipeline_mode<synchronous>, transform_indices = @transform_5, window_bounds = array<i64: 1, 512>}, {pipeline_mode = #tpu.pipeline_mode<synchronous>, transform_indices = @transform_6, window_bounds = array<i64: 128, 128>}, {pipeline_mode = #tpu.pipeline_mode<synchronous>, transform_indices = @transform_7, window_bounds = array<i64: 1, 128>}, {transform_indices = @transform_8, window_bounds = array<i64: 1, 1, 128>}, {pipeline_mode = #tpu.pipeline_mode<synchronous>, transform_indices = @transform_9, window_bounds = array<i64: 1, 128>}]} {
    %c0_i32 = arith.constant 0 : i32
    %0 = arith.cmpi eq, %arg0, %c0_i32 : i32
    %1 = arith.extui %0 : i1 to i32
    %c0_i32_0 = arith.constant 0 : i32
    %2 = arith.cmpi ne, %1, %c0_i32_0 : i32
    scf.if %2 {
      %c0_29 = arith.constant 0 : index
      %c0_30 = arith.constant 0 : index
      %49 = vector.load %arg4[%c0_29, %c0_30] : memref<1x128xf32, #tpu.memory_space<vmem>>, vector<1x128xf32>
      %c0_31 = arith.constant 0 : index
      %c0_32 = arith.constant 0 : index
      %50 = vector.load %arg12[%c0_31, %c0_32] : memref<1x128xf32, #tpu.memory_space<vmem>>, vector<1x128xf32>
      tpu.vector_store %arg12[%c0_31, %c0_32], %49 {strides = array<i32>} : memref<1x128xf32, #tpu.memory_space<vmem>>, vector<1x128xf32>,
    } else {
    }
    %c0 = arith.constant 0 : index
    %c0_1 = arith.constant 0 : index
    %c0_2 = arith.constant 0 : index
    %3 = vector.load %arg2[%c0, %c0_1, %c0_2] : memref<1x1x128xf32, #tpu.memory_space<vmem>>, vector<1x1x128xf32>
    %4 = vector.shape_cast %3 : vector<1x1x128xf32> to vector<1x128xf32>
    %c0_3 = arith.constant 0 : index
    %c0_4 = arith.constant 0 : index
    %5 = vector.load %arg3[%c0_3, %c0_4] : memref<1x128xf32, #tpu.memory_space<vmem>>, vector<1x128xf32>
    %6 = arith.addf %4, %5 : vector<1x128xf32>
    %c0_5 = arith.constant 0 : index
    %c0_6 = arith.constant 0 : index
    %7 = vector.load %arg12[%c0_5, %c0_6] : memref<1x128xf32, #tpu.memory_space<vmem>>, vector<1x128xf32>
    %8 = arith.truncf %6 : vector<1x128xf32> to vector<1x128xbf16>
    %c0_7 = arith.constant 0 : index
    %c0_8 = arith.constant 0 : index
    %9 = vector.load %arg5[%c0_7, %c0_8] : memref<128x512xbf16, #tpu.memory_space<vmem>>, vector<128x512xbf16>
    %cst = arith.constant dense<0.000000e+00> : vector<1x512xf32>
    %10 = tpu.matmul %8, %9, %cst {dimension_numbers = #tpu.dot_dimension_numbers<[1], [0], [0], [1], [0, 0, 1, 1], [], []>} : vector<1x128xbf16>, vector<128x512xbf16>, vector<1x512xf32> -> vector<1x512xf32>
    %11 = arith.truncf %7 : vector<1x128xf32> to vector<1x128xbf16>
    %c0_9 = arith.constant 0 : index
    %c0_10 = arith.constant 0 : index
    %12 = vector.load %arg6[%c0_9, %c0_10] : memref<128x512xbf16, #tpu.memory_space<vmem>>, vector<128x512xbf16>
    %cst_11 = arith.constant dense<0.000000e+00> : vector<1x512xf32>
    %13 = tpu.matmul %11, %12, %cst_11 {dimension_numbers = #tpu.dot_dimension_numbers<[1], [0], [0], [1], [0, 0, 1, 1], [], []>} : vector<1x128xbf16>, vector<128x512xbf16>, vector<1x512xf32> -> vector<1x512xf32>
    %14 = arith.addf %10, %13 : vector<1x512xf32>
    %c0_12 = arith.constant 0 : index
    %c0_13 = arith.constant 0 : index
    %15 = vector.load %arg7[%c0_12, %c0_13] : memref<1x512xf32, #tpu.memory_space<vmem>>, vector<1x512xf32>
    %16 = arith.addf %14, %15 : vector<1x512xf32>
    %17 = vector.extract_strided_slice %16 {offsets = [0, 0], sizes = [1, 128], strides = [1, 1]} : vector<1x512xf32> to vector<1x128xf32>
    %18 = arith.negf %17 : vector<1x128xf32>
    %19 = math.exp %18 : vector<1x128xf32>
    %cst_14 = arith.constant 1.000000e+00 : f32
    %20 = vector.broadcast %cst_14 : f32 to vector<1x128xf32>
    %21 = arith.addf %20, %19 : vector<1x128xf32>
    %22 = arith.divf %20, %21 : vector<1x128xf32>
    %23 = vector.extract_strided_slice %16 {offsets = [0, 128], sizes = [1, 128], strides = [1, 1]} : vector<1x512xf32> to vector<1x128xf32>
    %24 = arith.negf %23 : vector<1x128xf32>
    %25 = math.exp %24 : vector<1x128xf32>
    %cst_15 = arith.constant 1.000000e+00 : f32
    %26 = vector.broadcast %cst_15 : f32 to vector<1x128xf32>
    %27 = arith.addf %26, %25 : vector<1x128xf32>
    %28 = arith.divf %26, %27 : vector<1x128xf32>
    %29 = vector.extract_strided_slice %16 {offsets = [0, 256], sizes = [1, 128], strides = [1, 1]} : vector<1x512xf32> to vector<1x128xf32>
    %30 = vector.extract_strided_slice %16 {offsets = [0, 384], sizes = [1, 128], strides = [1, 1]} : vector<1x512xf32> to vector<1x128xf32>
    %31 = arith.mulf %22, %30 : vector<1x128xf32>
    %32 = arith.addf %29, %31 : vector<1x128xf32>
    %33 = math.tanh %32 : vector<1x128xf32>
    %cst_16 = arith.constant 1.000000e+00 : f32
    %34 = vector.broadcast %cst_16 : f32 to vector<1x128xf32>
    %35 = arith.subf %34, %28 : vector<1x128xf32>
    %36 = arith.mulf %35, %33 : vector<1x128xf32>
    %37 = arith.mulf %28, %7 : vector<1x128xf32>
    %38 = arith.addf %36, %37 : vector<1x128xf32>
    %c0_17 = arith.constant 0 : index
    %c0_18 = arith.constant 0 : index
    %39 = vector.load %arg12[%c0_17, %c0_18] : memref<1x128xf32, #tpu.memory_space<vmem>>, vector<1x128xf32>
    tpu.vector_store %arg12[%c0_17, %c0_18], %38 {strides = array<i32>} : memref<1x128xf32, #tpu.memory_space<vmem>>, vector<1x128xf32>,
    %c0_19 = arith.constant 0 : index
    %c0_20 = arith.constant 0 : index
    %40 = vector.load %arg11[%c0_19, %c0_20] : memref<1x128xf32, #tpu.memory_space<vmem>>, vector<1x128xf32>
    tpu.vector_store %arg11[%c0_19, %c0_20], %38 {strides = array<i32>} : memref<1x128xf32, #tpu.memory_space<vmem>>, vector<1x128xf32>,
    %41 = arith.truncf %38 : vector<1x128xf32> to vector<1x128xbf16>
    %c0_21 = arith.constant 0 : index
    %c0_22 = arith.constant 0 : index
    %42 = vector.load %arg8[%c0_21, %c0_22] : memref<128x128xbf16, #tpu.memory_space<vmem>>, vector<128x128xbf16>
    %cst_23 = arith.constant dense<0.000000e+00> : vector<1x128xf32>
    %43 = tpu.matmul %41, %42, %cst_23 {dimension_numbers = #tpu.dot_dimension_numbers<[1], [0], [0], [1], [0, 0, 1, 1], [], []>} : vector<1x128xbf16>, vector<128x128xbf16>, vector<1x128xf32> -> vector<1x128xf32>
    %c0_24 = arith.constant 0 : index
    %c0_25 = arith.constant 0 : index
    %44 = vector.load %arg9[%c0_24, %c0_25] : memref<1x128xf32, #tpu.memory_space<vmem>>, vector<1x128xf32>
    %45 = arith.addf %43, %44 : vector<1x128xf32>
    %c0_26 = arith.constant 0 : index
    %c0_27 = arith.constant 0 : index
    %c0_28 = arith.constant 0 : index
    %46 = vector.load %arg10[%c0_26, %c0_27, %c0_28] : memref<1x1x128xf32, #tpu.memory_space<vmem>>, vector<1x1x128xf32>
    %47 = vector.shape_cast %46 : vector<1x1x128xf32> to vector<1x128xf32>
    %48 = vector.shape_cast %45 : vector<1x128xf32> to vector<1x1x128xf32>
    tpu.vector_store %arg10[%c0_26, %c0_27, %c0_28], %48 {strides = array<i32>} : memref<1x1x128xf32, #tpu.memory_space<vmem>>, vector<1x1x128xf32>,
    return
  }
  func.func @transform_0(%arg0: i32, %arg1: memref<1xi32, #tpu.memory_space<smem>>) -> (i32, i32, i32) {
    %0 = arith.index_cast %arg0 : i32 to index
    %1 = memref.load %arg1[%0] : memref<1xi32, #tpu.memory_space<smem>>
    %c0_i32 = arith.constant 0 : i32
    %c0_i32_0 = arith.constant 0 : i32
    %c0_i32_1 = arith.constant 0 : i32
    return %1, %c0_i32, %c0_i32_0 : i32, i32, i32
  }
  func.func @transform_1(%arg0: i32, %arg1: memref<1xi32, #tpu.memory_space<smem>>) -> (i32, i32) {
    %c0_i32 = arith.constant 0 : i32
    %c0_i32_0 = arith.constant 0 : i32
    %c0_i32_1 = arith.constant 0 : i32
    return %c0_i32, %c0_i32_0 : i32, i32
  }
  func.func @transform_2(%arg0: i32, %arg1: memref<1xi32, #tpu.memory_space<smem>>) -> (i32, i32) {
    %c0_i32 = arith.constant 0 : i32
    %c0_i32_0 = arith.constant 0 : i32
    %c0_i32_1 = arith.constant 0 : i32
    return %c0_i32, %c0_i32_0 : i32, i32
  }
  func.func @transform_3(%arg0: i32, %arg1: memref<1xi32, #tpu.memory_space<smem>>) -> (i32, i32) {
    %c0_i32 = arith.constant 0 : i32
    %c0_i32_0 = arith.constant 0 : i32
    %c0_i32_1 = arith.constant 0 : i32
    return %c0_i32, %c0_i32_0 : i32, i32
  }
  func.func @transform_4(%arg0: i32, %arg1: memref<1xi32, #tpu.memory_space<smem>>) -> (i32, i32) {
    %c0_i32 = arith.constant 0 : i32
    %c0_i32_0 = arith.constant 0 : i32
    %c0_i32_1 = arith.constant 0 : i32
    return %c0_i32, %c0_i32_0 : i32, i32
  }
  func.func @transform_5(%arg0: i32, %arg1: memref<1xi32, #tpu.memory_space<smem>>) -> (i32, i32) {
    %c0_i32 = arith.constant 0 : i32
    %c0_i32_0 = arith.constant 0 : i32
    %c0_i32_1 = arith.constant 0 : i32
    return %c0_i32, %c0_i32_0 : i32, i32
  }
  func.func @transform_6(%arg0: i32, %arg1: memref<1xi32, #tpu.memory_space<smem>>) -> (i32, i32) {
    %c0_i32 = arith.constant 0 : i32
    %c0_i32_0 = arith.constant 0 : i32
    %c0_i32_1 = arith.constant 0 : i32
    return %c0_i32, %c0_i32_0 : i32, i32
  }
  func.func @transform_7(%arg0: i32, %arg1: memref<1xi32, #tpu.memory_space<smem>>) -> (i32, i32) {
    %c0_i32 = arith.constant 0 : i32
    %c0_i32_0 = arith.constant 0 : i32
    %c0_i32_1 = arith.constant 0 : i32
    return %c0_i32, %c0_i32_0 : i32, i32
  }
  func.func @transform_8(%arg0: i32, %arg1: memref<1xi32, #tpu.memory_space<smem>>) -> (i32, i32, i32) {
    %c0_i32 = arith.constant 0 : i32
    %c0_i32_0 = arith.constant 0 : i32
    %c0_i32_1 = arith.constant 0 : i32
    return %arg0, %c0_i32, %c0_i32_0 : i32, i32, i32
  }
  func.func @transform_9(%arg0: i32, %arg1: memref<1xi32, #tpu.memory_space<smem>>) -> (i32, i32) {
    %c0_i32 = arith.constant 0 : i32
    %c0_i32_0 = arith.constant 0 : i32
    %c0_i32_1 = arith.constant 0 : i32
    return %c0_i32, %c0_i32_0 : i32, i32
  }
}

</mosaic_0001>

<llo_original>
// kernel: _decode.1
$region0: #{_decode.1}
  #allocation0 [shape = 'u32[]', space=smem, size = 0x4, offset = 0x4, fixed_abs, tag = 'smem constant byte address 0x4 - core index']
  #allocation1 [shape = 'u32[144,128]{1,0:T(1,128)}', space=vmem, size = 0x12000, scoped, tag = 'internal scratch']
  #allocation2 [shape = 'f32[1,128]{1,0:T(1,128)}', space=vmem, size = 0x200, scoped, tag = 'scratch operand']
  #allocation3 [shape = 's32[1]{0}', space=sflag, size = 0x4, scoped, tag = 'scoped memory for _decode.1']
  #allocation4 [shape = 's32[1]{0:T(128)S(6)}', space=smem, size = 0x200, scoped, tag = 'prefetched SMEM operand 0']
  %s0 = inlined_call_operand.<no memory space> [shape: s32[1], index: 0, kind: input, shape index: {}]
  %s1 = inlined_call_operand.hbm [shape: f32[64,1,128], index: 1, kind: input, shape index: {}]
  %s2 = inlined_call_operand.vmem [shape: f32[1,128], index: 2, kind: input, shape index: {}]
  %s3 = inlined_call_operand.vmem [shape: f32[1,128], index: 3, kind: input, shape index: {}]
  %s4 = inlined_call_operand.hbm [shape: bf16[128,512], index: 4, kind: input, shape index: {}]
  %s5 = inlined_call_operand.hbm [shape: bf16[128,512], index: 5, kind: input, shape index: {}]
  %s6 = inlined_call_operand.vmem [shape: f32[1,512], index: 6, kind: input, shape index: {}]
  %s7 = inlined_call_operand.hbm [shape: bf16[128,128], index: 7, kind: input, shape index: {}]
  %s8 = inlined_call_operand.vmem [shape: f32[1,128], index: 8, kind: input, shape index: {}]
  %s9 = inlined_call_operand.hbm [shape: f32[1,1,128], index: 9, kind: output, shape index: {0}]
  %s10 = inlined_call_operand.hbm [shape: f32[1,128], index: 10, kind: output, shape index: {1}]
  %11 = xla_tuple %s9, %s10
  %s12 = sld [smem:[#allocation0]]
  $region70: #{_decode.1} parent=0
    _
  %s14 = ssub.s32 1, %s12
  %s15 = scalar_select 0, %s14, %s12
  %16 = sst [smem:[#allocation4]] %s0
  $region1: #{_decode.1} parent=0
    #allocation5 [shape = 'u8[512]{0}', space=vmem, size = 0x400, scoped, tag = 'input window, operand 1, single buffered']
    #allocation6 [shape = 's32[1]{0}', space=sflag, size = 0x4, scoped, tag = 'scoped memory for _decode.1']
    #allocation7 [shape = 's32[1]{0}', space=sflag, size = 0x4, scoped, tag = 'scoped memory for _decode.1']
    #allocation8 [shape = 'u8[131072]{0}', space=vmem, size = 0x20000, scoped, tag = 'input window, operand 4, single buffered']
    #allocation9 [shape = 's32[1]{0}', space=sflag, size = 0x4, scoped, tag = 'scoped memory for _decode.1']
    #allocation10 [shape = 'u8[131072]{0}', space=vmem, size = 0x20000, scoped, tag = 'input window, operand 5, single buffered']
    #allocation11 [shape = 'u8[32768]{0}', space=vmem, size = 0x8000, scoped, tag = 'input window, operand 7, single buffered']
    #allocation12 [shape = 's32[1]{0}', space=sflag, size = 0x4, scoped, tag = 'scoped memory for _decode.1']
    #allocation13 [shape = 'u8[512]{0}', space=vmem, size = 0x400, scoped, tag = 'output window, operand 0, single buffered']
    #allocation14 [shape = 'u8[512]{0}', space=vmem, size = 0x400, scoped, tag = 'output window, operand 1, single buffered']
    #allocation15 [shape = 's32[1]{0}', space=sflag, size = 0x4, scoped, tag = 'scoped memory for _decode.1']
    %17 = vsyncpa [#allocation6], 0
    %18 = vsyncpa [#allocation9], 0
    %19 = vsyncpa [#allocation12], 0
    %20 = vsyncpa [#allocation7], 0
    %21 = vsyncpa [#allocation15], 0
    // Predicated region
    $region2: #{_decode.1} parent=1 // pred_check
      _
    $region3: #{_decode.1} parent=1 // pred_check_branch
      %23 = sbr.rel (0) target = $region5
    $region4: #{_decode.1} parent=1 // pred_region
      %s24 = sld [smem:[#allocation4]]
      %s26 = ssub.s32 16, 16
      %27 = vsyncadd [#allocation6], %s26
      %s28 = smul.addr %s24, 16
      %s29 = scalar_lea.hbm %s1, %s28
      %s31 = sshll.u32 [#allocation5], 4
      %s32 = int_to_ptr.vmem [resolvable:$true] %s31
      %34 = dma.hbm_to_vmem [thread:$0]  %s29, 16, %s32, [#allocation6]
    $region5: #{_decode.1} parent=1 // pred_fallthru
      _
    // Predicated region
    $region6: #{_decode.1} parent=1 // pred_check
      _
    $region7: #{_decode.1} parent=1 // pred_check_branch
      %36 = sbr.rel (0) target = $region9
    $region8: #{_decode.1} parent=1 // pred_region
      _
    $region9: #{_decode.1} parent=1 // pred_fallthru
      _
    // Predicated region
    $region10: #{_decode.1} parent=1 // pred_check
      _
    $region11: #{_decode.1} parent=1 // pred_check_branch
      %38 = sbr.rel (0) target = $region13
    $region12: #{_decode.1} parent=1 // pred_region
      _
    $region13: #{_decode.1} parent=1 // pred_fallthru
      _
    // Predicated region
    $region14: #{_decode.1} parent=1 // pred_check
      _
    $region15: #{_decode.1} parent=1 // pred_check_branch
      %40 = sbr.rel (0) target = $region17
    $region16: #{_decode.1} parent=1 // pred_region
      %s42 = ssub.s32 4096, 4096
      %43 = vsyncadd [#allocation9], %s42
      %s44 = sshll.u32 [#allocation8], 4
      %s45 = int_to_ptr.vmem [resolvable:$true] %s44
      %50 = dma.hbm_to_vmem [thread:$0]  %s4, 4096, %s45, [#allocation9], 256, 256, 16
    $region17: #{_decode.1} parent=1 // pred_fallthru
      _
    // Predicated region
    $region18: #{_decode.1} parent=1 // pred_check
      _
    $region19: #{_decode.1} parent=1 // pred_check_branch
      %52 = sbr.rel (0) target = $region21
    $region20: #{_decode.1} parent=1 // pred_region
      %s54 = ssub.s32 4096, 4096
      %55 = vsyncadd [#allocation9], %s54
      %s56 = sshll.u32 [#allocation10], 4
      %s57 = int_to_ptr.vmem [resolvable:$true] %s56
      %62 = dma.hbm_to_vmem [thread:$0]  %s5, 4096, %s57, [#allocation9], 256, 256, 16
    $region21: #{_decode.1} parent=1 // pred_fallthru
      _
    // Predicated region
    $region22: #{_decode.1} parent=1 // pred_check
      _
    $region23: #{_decode.1} parent=1 // pred_check_branch
      %64 = sbr.rel (0) target = $region25
    $region24: #{_decode.1} parent=1 // pred_region
      _
    $region25: #{_decode.1} parent=1 // pred_fallthru
      _
    // Predicated region
    $region26: #{_decode.1} parent=1 // pred_check
      _
    $region27: #{_decode.1} parent=1 // pred_check_branch
      %66 = sbr.rel (0) target = $region29
    $region28: #{_decode.1} parent=1 // pred_region
      %s68 = ssub.s32 1024, 1024
      %69 = vsyncadd [#allocation12], %s68
      %s70 = sshll.u32 [#allocation11], 4
      %s71 = int_to_ptr.vmem [resolvable:$true] %s70
      %76 = dma.hbm_to_vmem [thread:$0]  %s7, 1024, %s71, [#allocation12], 64, 64, 4
    $region29: #{_decode.1} parent=1 // pred_fallthru
      _
    // Predicated region
    $region30: #{_decode.1} parent=1 // pred_check
      _
    $region31: #{_decode.1} parent=1 // pred_check_branch
      %78 = sbr.rel (0) target = $region33
    $region32: #{_decode.1} parent=1 // pred_region
      _
    $region33: #{_decode.1} parent=1 // pred_fallthru
      _
    // Predicated region
    $region34: #{_decode.1} parent=1 // pred_check
      _
    $region35: #{_decode.1} parent=1 // pred_check_branch
      %80 = sbr.rel (0) target = $region37
    $region36: #{_decode.1} parent=1 // pred_region
      %81 = dma.done [#allocation6], 16
    $region37: #{_decode.1} parent=1 // pred_fallthru
      _
    // Predicated region
    $region38: #{_decode.1} parent=1 // pred_check
      _
    $region39: #{_decode.1} parent=1 // pred_check_branch
      %83 = sbr.rel (0) target = $region41
    $region40: #{_decode.1} parent=1 // pred_region
      %84 = dma.done [#allocation9], 4096
    $region41: #{_decode.1} parent=1 // pred_fallthru
      _
    // Predicated region
    $region42: #{_decode.1} parent=1 // pred_check
      _
    $region43: #{_decode.1} parent=1 // pred_check_branch
      %86 = sbr.rel (0) target = $region45
    $region44: #{_decode.1} parent=1 // pred_region
      %87 = dma.done [#allocation9], 4096
    $region45: #{_decode.1} parent=1 // pred_fallthru
      _
    // Predicated region
    $region46: #{_decode.1} parent=1 // pred_check
      _
    $region47: #{_decode.1} parent=1 // pred_check_branch
      %89 = sbr.rel (0) target = $region49
    $region48: #{_decode.1} parent=1 // pred_region
      %90 = dma.done [#allocation12], 1024
    $region49: #{_decode.1} parent=1 // pred_fallthru
      _
    %s91 = sld [smem:[#allocation4]]
    %p93 = scmp.eq.s32.totalorder 0, 0
    // Predicated region
    $region50: #{_decode.1} parent=1 // pred_check
      %p94 = pneg %p93
    $region51: #{_decode.1} parent=1 // pred_check_branch
      %96 = sbr.rel (%p94) target = $region53
    $region52: #{_decode.1} parent=1 // pred_region
      %v97 = vld [vmem:[%s3] sm:$0x1]
      %98 = vst [vmem:[#allocation2] sm:$0x1] %v97
    $region53: #{_decode.1} parent=1 // pred_fallthru
      _
    %v99 = vld [vmem:[#allocation5] sm:$0x1]
    %v100 = vld [vmem:[%s2] sm:$0x1]
    %v101 = vadd.f32 %v99, %v100
    %v102 = vld [vmem:[#allocation2] sm:$0x1]
    %v103 = vpack.c.bf16 %v101, %v101
    %v104 = vld [vmem:[#allocation8] sm:$0xff]
    %v105 = vld [vmem:[#allocation8 + $0x8] sm:$0xff]
    %v106 = vld [vmem:[#allocation8 + $0x10] sm:$0xff]
    %v107 = vld [vmem:[#allocation8 + $0x18] sm:$0xff]
    %v108 = vld [vmem:[#allocation8 + $0x20] sm:$0xff]
    %v109 = vld [vmem:[#allocation8 + $0x28] sm:$0xff]
    %v110 = vld [vmem:[#allocation8 + $0x30] sm:$0xff]
    %v111 = vld [vmem:[#allocation8 + $0x38] sm:$0xff]
    %v112 = vld [vmem:[#allocation8 + $0x40] sm:$0xff]
    %v113 = vld [vmem:[#allocation8 + $0x48] sm:$0xff]
    %v114 = vld [vmem:[#allocation8 + $0x50] sm:$0xff]
    %v115 = vld [vmem:[#allocation8 + $0x58] sm:$0xff]
    %v116 = vld [vmem:[#allocation8 + $0x60] sm:$0xff]
    %v117 = vld [vmem:[#allocation8 + $0x68] sm:$0xff]
    %v118 = vld [vmem:[#allocation8 + $0x70] sm:$0xff]
    %v119 = vld [vmem:[#allocation8 + $0x78] sm:$0xff]
    %v120 = vld [vmem:[#allocation8 + $0x80] sm:$0xff]
    %v121 = vld [vmem:[#allocation8 + $0x88] sm:$0xff]
    %v122 = vld [vmem:[#allocation8 + $0x90] sm:$0xff]
    %v123 = vld [vmem:[#allocation8 + $0x98] sm:$0xff]
    %v124 = vld [vmem:[#allocation8 + $0xa0] sm:$0xff]
    %v125 = vld [vmem:[#allocation8 + $0xa8] sm:$0xff]
    %v126 = vld [vmem:[#allocation8 + $0xb0] sm:$0xff]
    %v127 = vld [vmem:[#allocation8 + $0xb8] sm:$0xff]
    %v128 = vld [vmem:[#allocation8 + $0xc0] sm:$0xff]
    %v129 = vld [vmem:[#allocation8 + $0xc8] sm:$0xff]
    %v130 = vld [vmem:[#allocation8 + $0xd0] sm:$0xff]
    %v131 = vld [vmem:[#allocation8 + $0xd8] sm:$0xff]
    %v132 = vld [vmem:[#allocation8 + $0xe0] sm:$0xff]
    %v133 = vld [vmem:[#allocation8 + $0xe8] sm:$0xff]
    %v134 = vld [vmem:[#allocation8 + $0xf0] sm:$0xff]
    %v135 = vld [vmem:[#allocation8 + $0xf8] sm:$0xff]
    %v136 = vpack.c.bf16 %v102, %v102
    %v137 = vld [vmem:[#allocation10] sm:$0xff]
    %v138 = vld [vmem:[#allocation10 + $0x8] sm:$0xff]
    %v139 = vld [vmem:[#allocation10 + $0x10] sm:$0xff]
    %v140 = vld [vmem:[#allocation10 + $0x18] sm:$0xff]
    %v141 = vld [vmem:[#allocation10 + $0x20] sm:$0xff]
    %v142 = vld [vmem:[#allocation10 + $0x28] sm:$0xff]
    %v143 = vld [vmem:[#allocation10 + $0x30] sm:$0xff]
    %v144 = vld [vmem:[#allocation10 + $0x38] sm:$0xff]
    %v145 = vld [vmem:[#allocation10 + $0x40] sm:$0xff]
    %v146 = vld [vmem:[#allocation10 + $0x48] sm:$0xff]
    %v147 = vld [vmem:[#allocation10 + $0x50] sm:$0xff]
    %v148 = vld [vmem:[#allocation10 + $0x58] sm:$0xff]
    %v149 = vld [vmem:[#allocation10 + $0x60] sm:$0xff]
    %v150 = vld [vmem:[#allocation10 + $0x68] sm:$0xff]
    %v151 = vld [vmem:[#allocation10 + $0x70] sm:$0xff]
    %v152 = vld [vmem:[#allocation10 + $0x78] sm:$0xff]
    %v153 = vld [vmem:[#allocation10 + $0x80] sm:$0xff]
    %v154 = vld [vmem:[#allocation10 + $0x88] sm:$0xff]
    %v155 = vld [vmem:[#allocation10 + $0x90] sm:$0xff]
    %v156 = vld [vmem:[#allocation10 + $0x98] sm:$0xff]
    %v157 = vld [vmem:[#allocation10 + $0xa0] sm:$0xff]
    %v158 = vld [vmem:[#allocation10 + $0xa8] sm:$0xff]
    %v159 = vld [vmem:[#allocation10 + $0xb0] sm:$0xff]
    %v160 = vld [vmem:[#allocation10 + $0xb8] sm:$0xff]
    %v161 = vld [vmem:[#allocation10 + $0xc0] sm:$0xff]
    %v162 = vld [vmem:[#allocation10 + $0xc8] sm:$0xff]
    %v163 = vld [vmem:[#allocation10 + $0xd0] sm:$0xff]
    %v164 = vld [vmem:[#allocation10 + $0xd8] sm:$0xff]
    %v165 = vld [vmem:[#allocation10 + $0xe0] sm:$0xff]
    %v166 = vld [vmem:[#allocation10 + $0xe8] sm:$0xff]
    %v167 = vld [vmem:[#allocation10 + $0xf0] sm:$0xff]
    %v168 = vld [vmem:[#allocation10 + $0xf8] sm:$0xff]
    %v201 = vunpack.c.l.b16 %v137
    %v202 = vunpack.c.h.b16 %v137
    %v203 = vunpack.c.l.b16 %v138
    %v204 = vunpack.c.h.b16 %v138
    %v205 = vunpack.c.l.b16 %v139
    %v206 = vunpack.c.h.b16 %v139
    %v207 = vunpack.c.l.b16 %v140
    %v208 = vunpack.c.h.b16 %v140
    %v209 = vunpack.c.l.b16 %v141
    %v210 = vunpack.c.h.b16 %v141
    %v211 = vunpack.c.l.b16 %v142
    %v212 = vunpack.c.h.b16 %v142
    %v213 = vunpack.c.l.b16 %v143
    %v214 = vunpack.c.h.b16 %v143
    %v215 = vunpack.c.l.b16 %v144
    %v216 = vunpack.c.h.b16 %v144
    %v217 = vunpack.c.l.b16 %v145
    %v218 = vunpack.c.h.b16 %v145
    %v219 = vunpack.c.l.b16 %v146
    %v220 = vunpack.c.h.b16 %v146
    %v221 = vunpack.c.l.b16 %v147
    %v222 = vunpack.c.h.b16 %v147
    %v223 = vunpack.c.l.b16 %v148
    %v224 = vunpack.c.h.b16 %v148
    %v225 = vunpack.c.l.b16 %v149
    %v226 = vunpack.c.h.b16 %v149
    %v227 = vunpack.c.l.b16 %v150
    %v228 = vunpack.c.h.b16 %v150
    %v229 = vunpack.c.l.b16 %v151
    %v230 = vunpack.c.h.b16 %v151
    %v231 = vunpack.c.l.b16 %v152
    %v232 = vunpack.c.h.b16 %v152
    %v233 = vunpack.c.l.b16 %v153
    %v234 = vunpack.c.h.b16 %v153
    %v235 = vunpack.c.l.b16 %v154
    %v236 = vunpack.c.h.b16 %v154
    %v237 = vunpack.c.l.b16 %v155
    %v238 = vunpack.c.h.b16 %v155
    %v239 = vunpack.c.l.b16 %v156
    %v240 = vunpack.c.h.b16 %v156
    %v241 = vunpack.c.l.b16 %v157
    %v242 = vunpack.c.h.b16 %v157
    %v243 = vunpack.c.l.b16 %v158
    %v244 = vunpack.c.h.b16 %v158
    %v245 = vunpack.c.l.b16 %v159
    %v246 = vunpack.c.h.b16 %v159
    %v247 = vunpack.c.l.b16 %v160
    %v248 = vunpack.c.h.b16 %v160
    %v249 = vunpack.c.l.b16 %v161
    %v250 = vunpack.c.h.b16 %v161
    %v251 = vunpack.c.l.b16 %v162
    %v252 = vunpack.c.h.b16 %v162
    %v253 = vunpack.c.l.b16 %v163
    %v254 = vunpack.c.h.b16 %v163
    %v255 = vunpack.c.l.b16 %v164
    %v256 = vunpack.c.h.b16 %v164
    %v257 = vunpack.c.l.b16 %v165
    %v258 = vunpack.c.h.b16 %v165
    %v259 = vunpack.c.l.b16 %v166
    %v260 = vunpack.c.h.b16 %v166
    %v261 = vunpack.c.l.b16 %v167
    %v262 = vunpack.c.h.b16 %v167
    %v263 = vunpack.c.l.b16 %v168
    %v264 = vunpack.c.h.b16 %v168
    %v265 = vpack.c.b16 %v205, %v201
    %v266 = vpack.c.b16 %v206, %v202
    %v267 = vpack.c.b16 %v207, %v203
    %v268 = vpack.c.b16 %v208, %v204
    %v269 = vpack.c.b16 %v213, %v209
    %v270 = vpack.c.b16 %v214, %v210
    %v271 = vpack.c.b16 %v215, %v211
    %v272 = vpack.c.b16 %v216, %v212
    %v273 = vpack.c.b16 %v221, %v217
    %v274 = vpack.c.b16 %v222, %v218
    %v275 = vpack.c.b16 %v223, %v219
    %v276 = vpack.c.b16 %v224, %v220
    %v277 = vpack.c.b16 %v229, %v225
    %v278 = vpack.c.b16 %v230, %v226
    %v279 = vpack.c.b16 %v231, %v227
    %v280 = vpack.c.b16 %v232, %v228
    %v281 = vpack.c.b16 %v237, %v233
    %v282 = vpack.c.b16 %v238, %v234
    %v283 = vpack.c.b16 %v239, %v235
    %v284 = vpack.c.b16 %v240, %v236
    %v285 = vpack.c.b16 %v245, %v241
    %v286 = vpack.c.b16 %v246, %v242
    %v287 = vpack.c.b16 %v247, %v243
    %v288 = vpack.c.b16 %v248, %v244
    %v289 = vpack.c.b16 %v253, %v249
    %v290 = vpack.c.b16 %v254, %v250
    %v291 = vpack.c.b16 %v255, %v251
    %v292 = vpack.c.b16 %v256, %v252
    %v293 = vpack.c.b16 %v261, %v257
    %v294 = vpack.c.b16 %v262, %v258
    %v295 = vpack.c.b16 %v263, %v259
    %v296 = vpack.c.b16 %v264, %v260
    %329 = vmatprep.subr.bf16.mxu0 %v266
    %330 = vmatpush1.bf16.msra.mxu0 %v265
    %331 = vmatprep.subr.bf16.mxu0 %v270
    %332 = vmatpush1.bf16.msra.mxu0 %v269
    %333 = vmatprep.subr.bf16.mxu0 %v274
    %334 = vmatpush1.bf16.msra.mxu0 %v273
    %335 = vmatprep.subr.bf16.mxu0 %v278
    %336 = vmatpush1.bf16.msra.mxu0 %v277
    %337 = vmatprep.subr.bf16.mxu0 %v282
    %338 = vmatpush1.bf16.msra.mxu0 %v281
    %339 = vmatprep.subr.bf16.mxu0 %v286
    %340 = vmatpush1.bf16.msra.mxu0 %v285
    %341 = vmatprep.subr.bf16.mxu0 %v290
    %342 = vmatpush1.bf16.msra.mxu0 %v289
    %343 = vmatprep.subr.bf16.mxu0 %v294
    %344 = vmatpush1.bf16.msra.mxu0 %v293
    %345 = vmatprep.subr.bf16.mxu0 0
    %346 = vmatpush1.bf16.msra.mxu0 0
    %347 = vmatprep.subr.bf16.mxu0 0
    %348 = vmatpush1.bf16.msra.mxu0 0
    %349 = vmatprep.subr.bf16.mxu0 0
    %350 = vmatpush1.bf16.msra.mxu0 0
    %351 = vmatprep.subr.bf16.mxu0 0
    %352 = vmatpush1.bf16.msra.mxu0 0
    %353 = vmatprep.subr.bf16.mxu0 0
    %354 = vmatpush1.bf16.msra.mxu0 0
    %355 = vmatprep.subr.bf16.mxu0 0
    %356 = vmatpush1.bf16.msra.mxu0 0
    %357 = vmatprep.subr.bf16.mxu0 0
    %358 = vmatpush1.bf16.msra.mxu0 0
    %359 = vmatprep.subr.bf16.mxu0 0
    %360 = vmatpush1.bf16.msra.mxu0 0
    %361 = vmatprep.mubr.bf16.mxu0 0
    %362 = vmatmul.mubr.bf16.gmra.mrb[0].mxu0 %v136
    %v363 = vpop.f32.mrb[0].mxu0
    %v364 = vadd.f32 0.0, %v363
    %v365 = vpop.f32.mrb[0].mxu0
    %v366 = vadd.f32 0.0, %v365
    %v367 = vpop.f32.mrb[0].mxu0
    %v368 = vpop.f32.mrb[0].mxu0
    %369 = vdwg.mxu0
    %370 = vmatprep.subr.bf16.mxu0 %v268
    %371 = vmatpush1.bf16.msra.mxu0 %v267
    %372 = vmatprep.subr.bf16.mxu0 %v272
    %373 = vmatpush1.bf16.msra.mxu0 %v271
    %374 = vmatprep.subr.bf16.mxu0 %v276
    %375 = vmatpush1.bf16.msra.mxu0 %v275
    %376 = vmatprep.subr.bf16.mxu0 %v280
    %377 = vmatpush1.bf16.msra.mxu0 %v279
    %378 = vmatprep.subr.bf16.mxu0 %v284
    %379 = vmatpush1.bf16.msra.mxu0 %v283
    %380 = vmatprep.subr.bf16.mxu0 %v288
    %381 = vmatpush1.bf16.msra.mxu0 %v287
    %382 = vmatprep.subr.bf16.mxu0 %v292
    %383 = vmatpush1.bf16.msra.mxu0 %v291
    %384 = vmatprep.subr.bf16.mxu0 %v296
    %385 = vmatpush1.bf16.msra.mxu0 %v295
    %386 = vmatprep.subr.bf16.mxu0 0
    %387 = vmatpush1.bf16.msra.mxu0 0
    %388 = vmatprep.subr.bf16.mxu0 0
    %389 = vmatpush1.bf16.msra.mxu0 0
    %390 = vmatprep.subr.bf16.mxu0 0
    %391 = vmatpush1.bf16.msra.mxu0 0
    %392 = vmatprep.subr.bf16.mxu0 0
    %393 = vmatpush1.bf16.msra.mxu0 0
    %394 = vmatprep.subr.bf16.mxu0 0
    %395 = vmatpush1.bf16.msra.mxu0 0
    %396 = vmatprep.subr.bf16.mxu0 0
    %397 = vmatpush1.bf16.msra.mxu0 0
    %398 = vmatprep.subr.bf16.mxu0 0
    %399 = vmatpush1.bf16.msra.mxu0 0
    %400 = vmatprep.subr.bf16.mxu0 0
    %401 = vmatpush1.bf16.msra.mxu0 0
    %402 = vmatprep.mubr.bf16.mxu0 0
    %403 = vmatmul.mubr.bf16.gmra.mrb[0].mxu0 %v136
    %v404 = vpop.f32.mrb[0].mxu0
    %v405 = vadd.f32 0.0, %v404
    %v406 = vpop.f32.mrb[0].mxu0
    %v407 = vadd.f32 0.0, %v406
    %v408 = vpop.f32.mrb[0].mxu0
    %v409 = vpop.f32.mrb[0].mxu0
    %410 = vdwg.mxu0
    %v443 = vunpack.c.l.b16 %v104
    %v444 = vunpack.c.h.b16 %v104
    %v445 = vunpack.c.l.b16 %v105
    %v446 = vunpack.c.h.b16 %v105
    %v447 = vunpack.c.l.b16 %v106
    %v448 = vunpack.c.h.b16 %v106
    %v449 = vunpack.c.l.b16 %v107
    %v450 = vunpack.c.h.b16 %v107
    %v451 = vunpack.c.l.b16 %v108
    %v452 = vunpack.c.h.b16 %v108
    %v453 = vunpack.c.l.b16 %v109
    %v454 = vunpack.c.h.b16 %v109
    %v455 = vunpack.c.l.b16 %v110
    %v456 = vunpack.c.h.b16 %v110
    %v457 = vunpack.c.l.b16 %v111
    %v458 = vunpack.c.h.b16 %v111
    %v459 = vunpack.c.l.b16 %v112
    %v460 = vunpack.c.h.b16 %v112
    %v461 = vunpack.c.l.b16 %v113
    %v462 = vunpack.c.h.b16 %v113
    %v463 = vunpack.c.l.b16 %v114
    %v464 = vunpack.c.h.b16 %v114
    %v465 = vunpack.c.l.b16 %v115
    %v466 = vunpack.c.h.b16 %v115
    %v467 = vunpack.c.l.b16 %v116
    %v468 = vunpack.c.h.b16 %v116
    %v469 = vunpack.c.l.b16 %v117
    %v470 = vunpack.c.h.b16 %v117
    %v471 = vunpack.c.l.b16 %v118
    %v472 = vunpack.c.h.b16 %v118
    %v473 = vunpack.c.l.b16 %v119
    %v474 = vunpack.c.h.b16 %v119
    %v475 = vunpack.c.l.b16 %v120
    %v476 = vunpack.c.h.b16 %v120
    %v477 = vunpack.c.l.b16 %v121
    %v478 = vunpack.c.h.b16 %v121
    %v479 = vunpack.c.l.b16 %v122
    %v480 = vunpack.c.h.b16 %v122
    %v481 = vunpack.c.l.b16 %v123
    %v482 = vunpack.c.h.b16 %v123
    %v483 = vunpack.c.l.b16 %v124
    %v484 = vunpack.c.h.b16 %v124
    %v485 = vunpack.c.l.b16 %v125
    %v486 = vunpack.c.h.b16 %v125
    %v487 = vunpack.c.l.b16 %v126
    %v488 = vunpack.c.h.b16 %v126
    %v489 = vunpack.c.l.b16 %v127
    %v490 = vunpack.c.h.b16 %v127
    %v491 = vunpack.c.l.b16 %v128
    %v492 = vunpack.c.h.b16 %v128
    %v493 = vunpack.c.l.b16 %v129
    %v494 = vunpack.c.h.b16 %v129
    %v495 = vunpack.c.l.b16 %v130
    %v496 = vunpack.c.h.b16 %v130
    %v497 = vunpack.c.l.b16 %v131
    %v498 = vunpack.c.h.b16 %v131
    %v499 = vunpack.c.l.b16 %v132
    %v500 = vunpack.c.h.b16 %v132
    %v501 = vunpack.c.l.b16 %v133
    %v502 = vunpack.c.h.b16 %v133
    %v503 = vunpack.c.l.b16 %v134
    %v504 = vunpack.c.h.b16 %v134
    %v505 = vunpack.c.l.b16 %v135
    %v506 = vunpack.c.h.b16 %v135
    %v507 = vpack.c.b16 %v447, %v443
    %v508 = vpack.c.b16 %v448, %v444
    %v509 = vpack.c.b16 %v449, %v445
    %v510 = vpack.c.b16 %v450, %v446
    %v511 = vpack.c.b16 %v455, %v451
    %v512 = vpack.c.b16 %v456, %v452
    %v513 = vpack.c.b16 %v457, %v453
    %v514 = vpack.c.b16 %v458, %v454
    %v515 = vpack.c.b16 %v463, %v459
    %v516 = vpack.c.b16 %v464, %v460
    %v517 = vpack.c.b16 %v465, %v461
    %v518 = vpack.c.b16 %v466, %v462
    %v519 = vpack.c.b16 %v471, %v467
    %v520 = vpack.c.b16 %v472, %v468
    %v521 = vpack.c.b16 %v473, %v469
    %v522 = vpack.c.b16 %v474, %v470
    %v523 = vpack.c.b16 %v479, %v475
    %v524 = vpack.c.b16 %v480, %v476
    %v525 = vpack.c.b16 %v481, %v477
    %v526 = vpack.c.b16 %v482, %v478
    %v527 = vpack.c.b16 %v487, %v483
    %v528 = vpack.c.b16 %v488, %v484
    %v529 = vpack.c.b16 %v489, %v485
    %v530 = vpack.c.b16 %v490, %v486
    %v531 = vpack.c.b16 %v495, %v491
    %v532 = vpack.c.b16 %v496, %v492
    %v533 = vpack.c.b16 %v497, %v493
    %v534 = vpack.c.b16 %v498, %v494
    %v535 = vpack.c.b16 %v503, %v499
    %v536 = vpack.c.b16 %v504, %v500
    %v537 = vpack.c.b16 %v505, %v501
    %v538 = vpack.c.b16 %v506, %v502
    %571 = vmatprep.subr.bf16.mxu0 %v508
    %572 = vmatpush1.bf16.msra.mxu0 %v507
    %573 = vmatprep.subr.bf16.mxu0 %v512
    %574 = vmatpush1.bf16.msra.mxu0 %v511
    %575 = vmatprep.subr.bf16.mxu0 %v516
    %576 = vmatpush1.bf16.msra.mxu0 %v515
    %577 = vmatprep.subr.bf16.mxu0 %v520
    %578 = vmatpush1.bf16.msra.mxu0 %v519
    %579 = vmatprep.subr.bf16.mxu0 %v524
    %580 = vmatpush1.bf16.msra.mxu0 %v523
    %581 = vmatprep.subr.bf16.mxu0 %v528
    %582 = vmatpush1.bf16.msra.mxu0 %v527
    %583 = vmatprep.subr.bf16.mxu0 %v532
    %584 = vmatpush1.bf16.msra.mxu0 %v531
    %585 = vmatprep.subr.bf16.mxu0 %v536
    %586 = vmatpush1.bf16.msra.mxu0 %v535
    %587 = vmatprep.subr.bf16.mxu0 0
    %588 = vmatpush1.bf16.msra.mxu0 0
    %589 = vmatprep.subr.bf16.mxu0 0
    %590 = vmatpush1.bf16.msra.mxu0 0
    %591 = vmatprep.subr.bf16.mxu0 0
    %592 = vmatpush1.bf16.msra.mxu0 0
    %593 = vmatprep.subr.bf16.mxu0 0
    %594 = vmatpush1.bf16.msra.mxu0 0
    %595 = vmatprep.subr.bf16.mxu0 0
    %596 = vmatpush1.bf16.msra.mxu0 0
    %597 = vmatprep.subr.bf16.mxu0 0
    %598 = vmatpush1.bf16.msra.mxu0 0
    %599 = vmatprep.subr.bf16.mxu0 0
    %600 = vmatpush1.bf16.msra.mxu0 0
    %601 = vmatprep.subr.bf16.mxu0 0
    %602 = vmatpush1.bf16.msra.mxu0 0
    %603 = vmatprep.mubr.bf16.mxu0 0
    %604 = vmatmul.mubr.bf16.gmra.mrb[0].mxu0 %v103
    %v605 = vpop.f32.mrb[0].mxu0
    %v606 = vadd.f32 %v364, %v605
    %v607 = vpop.f32.mrb[0].mxu0
    %v608 = vadd.f32 %v366, %v607
    %v609 = vpop.f32.mrb[0].mxu0
    %v610 = vpop.f32.mrb[0].mxu0
    %611 = vdwg.mxu0
    %612 = vmatprep.subr.bf16.mxu0 %v510
    %613 = vmatpush1.bf16.msra.mxu0 %v509
    %614 = vmatprep.subr.bf16.mxu0 %v514
    %615 = vmatpush1.bf16.msra.mxu0 %v513
    %616 = vmatprep.subr.bf16.mxu0 %v518
    %617 = vmatpush1.bf16.msra.mxu0 %v517
    %618 = vmatprep.subr.bf16.mxu0 %v522
    %619 = vmatpush1.bf16.msra.mxu0 %v521
    %620 = vmatprep.subr.bf16.mxu0 %v526
    %621 = vmatpush1.bf16.msra.mxu0 %v525
    %622 = vmatprep.subr.bf16.mxu0 %v530
    %623 = vmatpush1.bf16.msra.mxu0 %v529
    %624 = vmatprep.subr.bf16.mxu0 %v534
    %625 = vmatpush1.bf16.msra.mxu0 %v533
    %626 = vmatprep.subr.bf16.mxu0 %v538
    %627 = vmatpush1.bf16.msra.mxu0 %v537
    %628 = vmatprep.subr.bf16.mxu0 0
    %629 = vmatpush1.bf16.msra.mxu0 0
    %630 = vmatprep.subr.bf16.mxu0 0
    %631 = vmatpush1.bf16.msra.mxu0 0
    %632 = vmatprep.subr.bf16.mxu0 0
    %633 = vmatpush1.bf16.msra.mxu0 0
    %634 = vmatprep.subr.bf16.mxu0 0
    %635 = vmatpush1.bf16.msra.mxu0 0
    %636 = vmatprep.subr.bf16.mxu0 0
    %637 = vmatpush1.bf16.msra.mxu0 0
    %638 = vmatprep.subr.bf16.mxu0 0
    %639 = vmatpush1.bf16.msra.mxu0 0
    %640 = vmatprep.subr.bf16.mxu0 0
    %641 = vmatpush1.bf16.msra.mxu0 0
    %642 = vmatprep.subr.bf16.mxu0 0
    %643 = vmatpush1.bf16.msra.mxu0 0
    %644 = vmatprep.mubr.bf16.mxu0 0
    %645 = vmatmul.mubr.bf16.gmra.mrb[0].mxu0 %v103
    %v646 = vpop.f32.mrb[0].mxu0
    %v647 = vadd.f32 %v405, %v646
    %v648 = vpop.f32.mrb[0].mxu0
    %v649 = vadd.f32 %v407, %v648
    %v650 = vpop.f32.mrb[0].mxu0
    %v651 = vpop.f32.mrb[0].mxu0
    %652 = vdwg.mxu0
    %v653 = vld [vmem:[%s6] sm:$0xf]
    %v655 = vlaneseq
    %v656 = vshrl.u32 %v655, 7
    %v657 = vsub.s32 0, %v656
    %v658 = vrot.slane %v653, %v657
    %v659 = vlaneseq
    %v660 = vshrl.u32 %v659, 7
    %v661 = vsub.s32 1, %v660
    %v662 = vrot.slane %v653, %v661
    %v663 = vlaneseq
    %v664 = vshrl.u32 %v663, 7
    %v665 = vsub.s32 2, %v664
    %v666 = vrot.slane %v653, %v665
    %v667 = vlaneseq
    %v668 = vshrl.u32 %v667, 7
    %v669 = vsub.s32 3, %v668
    %v670 = vrot.slane %v653, %v669
    %v675 = vadd.f32 %v606, %v658
    %v676 = vadd.f32 %v608, %v662
    %v677 = vadd.f32 %v647, %v666
    %v678 = vadd.f32 %v649, %v670
    %v679 = vxor.u32 %v675, 2147483648
    %v680 = vmul.f32 %v679, 1.442695
    %v681 = vpow.pop %v680
    %v682 = vadd.f32 %v681, 1.0
    %v683 = vrcp.pop %v682
    %v684 = vmul.f32 1.0, %v683
    %v685 = vxor.u32 %v676, 2147483648
    %v686 = vmul.f32 %v685, 1.442695
    %v687 = vpow.pop %v686
    %v688 = vadd.f32 %v687, 1.0
    %v689 = vrcp.pop %v688
    %v690 = vmul.f32 1.0, %v689
    %v691 = vmul.f32 %v684, %v678
    %v692 = vadd.f32 %v677, %v691
    %v693 = vtanh.pop %v692
    %v694 = vsub.f32 1.0, %v690
    %v695 = vmul.f32 %v694, %v693
    %v696 = vmul.f32 %v690, %v102
    %v697 = vadd.f32 %v695, %v696
    %698 = vst [vmem:[#allocation2] sm:$0x1] %v697
    %699 = vst [vmem:[#allocation14] sm:$0x1] %v697
    %v700 = vpack.c.bf16 %v697, %v697
    %v701 = vld [vmem:[#allocation11] sm:$0xf]
    %v702 = vld [vmem:[#allocation11 + $0x4] sm:$0xf]
    %v703 = vld [vmem:[#allocation11 + $0x8] sm:$0xf]
    %v704 = vld [vmem:[#allocation11 + $0xc] sm:$0xf]
    %v705 = vld [vmem:[#allocation11 + $0x10] sm:$0xf]
    %v706 = vld [vmem:[#allocation11 + $0x14] sm:$0xf]
    %v707 = vld [vmem:[#allocation11 + $0x18] sm:$0xf]
    %v708 = vld [vmem:[#allocation11 + $0x1c] sm:$0xf]
    %v709 = vld [vmem:[#allocation11 + $0x20] sm:$0xf]
    %v710 = vld [vmem:[#allocation11 + $0x24] sm:$0xf]
    %v711 = vld [vmem:[#allocation11 + $0x28] sm:$0xf]
    %v712 = vld [vmem:[#allocation11 + $0x2c] sm:$0xf]
    %v713 = vld [vmem:[#allocation11 + $0x30] sm:$0xf]
    %v714 = vld [vmem:[#allocation11 + $0x34] sm:$0xf]
    %v715 = vld [vmem:[#allocation11 + $0x38] sm:$0xf]
    %v716 = vld [vmem:[#allocation11 + $0x3c] sm:$0xf]
    %v717 = vld [vmem:[%s8] sm:$0x1]
    %v734 = vunpack.c.l.b16 %v701
    %v735 = vunpack.c.l.b16 %v702
    %v736 = vunpack.c.l.b16 %v703
    %v737 = vunpack.c.l.b16 %v704
    %v738 = vunpack.c.l.b16 %v705
    %v739 = vunpack.c.l.b16 %v706
    %v740 = vunpack.c.l.b16 %v707
    %v741 = vunpack.c.l.b16 %v708
    %v742 = vunpack.c.l.b16 %v709
    %v743 = vunpack.c.l.b16 %v710
    %v744 = vunpack.c.l.b16 %v711
    %v745 = vunpack.c.l.b16 %v712
    %v746 = vunpack.c.l.b16 %v713
    %v747 = vunpack.c.l.b16 %v714
    %v748 = vunpack.c.l.b16 %v715
    %v749 = vunpack.c.l.b16 %v716
    %v750 = vpack.c.b16 %v735, %v734
    %v751 = vpack.c.b16 %v737, %v736
    %v752 = vpack.c.b16 %v739, %v738
    %v753 = vpack.c.b16 %v741, %v740
    %v754 = vpack.c.b16 %v743, %v742
    %v755 = vpack.c.b16 %v745, %v744
    %v756 = vpack.c.b16 %v747, %v746
    %v757 = vpack.c.b16 %v749, %v748
    %766 = vmatprep.subr.bf16.mxu0 0
    %767 = vmatpush1.bf16.msra.mxu0 %v750
    %768 = vmatprep.subr.bf16.mxu0 0
    %769 = vmatpush1.bf16.msra.mxu0 %v751
    %770 = vmatprep.subr.bf16.mxu0 0
    %771 = vmatpush1.bf16.msra.mxu0 %v752
    %772 = vmatprep.subr.bf16.mxu0 0
    %773 = vmatpush1.bf16.msra.mxu0 %v753
    %774 = vmatprep.subr.bf16.mxu0 0
    %775 = vmatpush1.bf16.msra.mxu0 %v754
    %776 = vmatprep.subr.bf16.mxu0 0
    %777 = vmatpush1.bf16.msra.mxu0 %v755
    %778 = vmatprep.subr.bf16.mxu0 0
    %779 = vmatpush1.bf16.msra.mxu0 %v756
    %780 = vmatprep.subr.bf16.mxu0 0
    %781 = vmatpush1.bf16.msra.mxu0 %v757
    %782 = vmatprep.subr.bf16.mxu0 0
    %783 = vmatpush1.bf16.msra.mxu0 0
    %784 = vmatprep.subr.bf16.mxu0 0
    %785 = vmatpush1.bf16.msra.mxu0 0
    %786 = vmatprep.subr.bf16.mxu0 0
    %787 = vmatpush1.bf16.msra.mxu0 0
    %788 = vmatprep.subr.bf16.mxu0 0
    %789 = vmatpush1.bf16.msra.mxu0 0
    %790 = vmatprep.subr.bf16.mxu0 0
    %791 = vmatpush1.bf16.msra.mxu0 0
    %792 = vmatprep.subr.bf16.mxu0 0
    %793 = vmatpush1.bf16.msra.mxu0 0
    %794 = vmatprep.subr.bf16.mxu0 0
    %795 = vmatpush1.bf16.msra.mxu0 0
    %796 = vmatprep.subr.bf16.mxu0 0
    %797 = vmatpush1.bf16.msra.mxu0 0
    %798 = vmatprep.mubr.bf16.mxu0 0
    %799 = vmatmul.mubr.bf16.gmra.mrb[0].mxu0 %v700
    %v800 = vpop.f32.mrb[0].mxu0
    %v801 = vadd.f32 %v717, %v800
    %v802 = vpop.f32.mrb[0].mxu0
    %v803 = vpop.f32.mrb[0].mxu0
    %v804 = vpop.f32.mrb[0].mxu0
    %805 = vdwg.mxu0
    %806 = vst [vmem:[#allocation13] sm:$0x1] %v801
    // Predicated region
    $region54: #{_decode.1} parent=1 // pred_check
      _
    $region55: #{_decode.1} parent=1 // pred_check_branch
      %808 = sbr.rel (0) target = $region57
    $region56: #{_decode.1} parent=1 // pred_region
      %s810 = ssub.s32 16, 16
      %811 = vsyncadd [#allocation7], %s810
      %s813 = sshll.u32 [#allocation13], 4
      %s814 = int_to_ptr.vmem [resolvable:$true] %s813
      %816 = dma.vmem_to_hbm [thread:$0]  %s814, 16, %s9, [#allocation7]
    $region57: #{_decode.1} parent=1 // pred_fallthru
      _
    // Predicated region
    $region58: #{_decode.1} parent=1 // pred_check
      _
    $region59: #{_decode.1} parent=1 // pred_check_branch
      %818 = sbr.rel (0) target = $region61
    $region60: #{_decode.1} parent=1 // pred_region
      %s820 = ssub.s32 16, 16
      %821 = vsyncadd [#allocation15], %s820
      %s823 = sshll.u32 [#allocation14], 4
      %s824 = int_to_ptr.vmem [resolvable:$true] %s823
      %826 = dma.vmem_to_hbm [thread:$0]  %s824, 16, %s10, [#allocation15]
    $region61: #{_decode.1} parent=1 // pred_fallthru
      _
    // Predicated region
    $region62: #{_decode.1} parent=1 // pred_check
      _
    $region63: #{_decode.1} parent=1 // pred_check_branch
      %828 = sbr.rel (0) target = $region65
    $region64: #{_decode.1} parent=1 // pred_region
      %829 = dma.done [#allocation7], 16
    $region65: #{_decode.1} parent=1 // pred_fallthru
      _
    // Predicated region
    $region66: #{_decode.1} parent=1 // pred_check
      _
    $region67: #{_decode.1} parent=1 // pred_check_branch
      %831 = sbr.rel (0) target = $region69
    $region68: #{_decode.1} parent=1 // pred_region
      %832 = dma.done [#allocation15], 16
    $region69: #{_decode.1} parent=1 // pred_fallthru
      _
    %833 = vsyncpa [#allocation6], 1
    %834 = vsyncpa [#allocation9], 1
    %835 = vsyncpa [#allocation12], 1
    %836 = vsyncpa [#allocation7], 1
    %837 = vsyncpa [#allocation15], 1

</llo_original>
